<compile_context>
chip_gen: v7x
topology: tpu7x:2x2x1
jax: 0.10.0
libtpu: 0.0.40
codegen_flags: <defaults>
</compile_context>

<pallas_src>
import functools

import jax
import jax.numpy as jnp
from jax import lax
from jax.experimental import pallas as pl
from jax.experimental.pallas import tpu as pltpu


def _ge2e_kernel(w_ref, et_ref, out_ref, *, N, M):
    # w_ref:  SMEM (1,)    float32   -> scale w (b cancels; see wrapper)
    # et_ref: VMEM (D, NM) bfloat16  -> embeddings, utterance axis lane-dense
    # out_ref: SMEM (1,)   float32   -> scalar loss
    D, NM = et_ref.shape
    inv_M = 1.0 / M
    inv_Mm1 = 1.0 / (M - 1)
    w = w_ref[0]

    ef = et_ref[...]                                        # (D, NM) bf16

    # Own-speaker mask (N, NM): own[j, r] <=> j*M <= r < (j+1)*M.
    # Built from a (N,1) sublane iota and a (1,NM) lane iota; no big int32
    # temporaries and no integer division.
    spk0 = lax.broadcasted_iota(jnp.int32, (N, 1), 0) * M   # (N, 1): j*M
    col = lax.broadcasted_iota(jnp.int32, (1, NM), 1)       # (1, NM): r
    own = (col >= spk0) & (col < spk0 + M)                  # (N, NM) bool

    # Per-speaker sums via MXU segment-sum (exact 0/1 mask, f32 accumulation):
    #   s_T[d, j] = sum_{r in speaker j} e[d, r]
    own_b = own.astype(jnp.bfloat16)                        # (N, NM) 0/1
    s_T = lax.dot_general(
        ef, own_b,
        dimension_numbers=(((1,), (1,)), ((), ())),
        preferred_element_type=jnp.float32)                 # (D, N) f32

    # w-scaled centroids (w folded here; b dropped -- cancels in lse - target).
    cw_T = (s_T * (w * inv_M)).astype(jnp.bfloat16)         # (D, N) bf16

    # w-scaled similarities, utterances lane-dense:
    #   sim[j, r] = w * dot(c[j], e[r])       (N, D)^T-style x (D, NM) on MXU
    sim = lax.dot_general(
        cw_T, ef,
        dimension_numbers=(((0,), (0,)), ((), ())),
        preferred_element_type=jnp.float32)                 # (N, NM) f32

    # w * ||e_r||^2 as a lane-dense (1, NM) row: sublane (XLU) reduce, f32 acc.
    ef32 = ef.astype(jnp.float32)
    wssq = w * jnp.sum(ef32 * ef32, axis=0, keepdims=True)  # (1, NM)

    # Own-centroid similarity per utterance (sublane reduce), then the
    # self-excluded centroid similarity:
    #   w*dot((s[j]-e_r)/(M-1), e_r) = (M*w*dot(c[j],e_r) - w*||e_r||^2)/(M-1)
    own_sim = jnp.sum(jnp.where(own, sim, 0.0), axis=0, keepdims=True)  # (1, NM)
    diag = (M * own_sim - wssq) * inv_Mm1                               # (1, NM)

    # Logits (sans the constant b) -- overwrites sim, no extra full-size temp.
    logits = jnp.where(own, diag, sim)                                  # (N, NM)

    # Softmax cross-entropy over the speaker (sublane) axis, mean over utts.
    mx = jnp.max(logits, axis=0, keepdims=True)                         # (1, NM)
    lse = mx + jnp.log(jnp.sum(jnp.exp(logits - mx), axis=0, keepdims=True))
    out_ref[0] = jnp.mean(lse - diag)


def ge2e_loss(e, w, b):
    """GE2E loss. e: (N, M, D) L2-normalized embeddings; w, b: scalar params.

    The cross-entropy loss is exactly invariant to the bias b (it adds the same
    constant to every logit of a column and to the target), so b is accepted for
    API parity but never enters the kernel.
    """
    N, M, D = e.shape
    assert M > 1, "GE2E requires M >= 2 utterances per speaker (division by M-1)"
    NM = N * M
    del b  # cancels exactly in (logsumexp - target); see kernel comments.

    # bf16 on the wire + NM-minor (lane-dense) layout: halves DMA bytes and
    # avoids lane-padding D (< 128) to 128 in VMEM.  Layout plumbing only; all
    # reductions/accumulation inside the kernel are f32.
    et = e.astype(jnp.bfloat16).reshape(NM, D).T            # (D, NM) bf16
    w_arr = jnp.asarray(w, jnp.float32).reshape(1)

    cost = pl.CostEstimate(
        flops=(2 * D * NM * N          # MXU segment-sum (centroids)
               + 2 * N * D * NM        # similarity matmul
               + 3 * D * NM            # ||e||^2 square + reduce
               + 12 * N * NM),         # mask/select/softmax epilogue
        transcendentals=N * NM + NM,
        bytes_accessed=D * NM * 2 + 8,
    )

    # Explicit VMEM budget so large N*M never silently relies on v5e's 16 MiB
    # scoped default; demo sizes resolve to the 16 MiB floor.
    vmem_bytes = (2 * D * NM * 2       # double-buffered bf16 embedding slab
                  + D * NM * 4         # f32 upcast for ||e||^2
                  + 6 * N * NM * 4     # (N, NM) f32 epilogue temporaries
                  + (2 << 20))         # slack for Mosaic tile padding
    vmem_limit = int(min(max(vmem_bytes, 16 << 20), 64 << 20))

    # TODO(synk): for production sizes (large N*M*D), tile the NM lane axis with
    # a 1-D "parallel" grid over precomputed centroids and per-block partial
    # (lse - target) sums, so both v7x TensorCores are used and per-block VMEM
    # stays bounded; at typical GE2E sizes the whole problem fits one core's
    # VMEM and per-call overhead dominates, so single-shot is faster.
    out = pl.pallas_call(
        functools.partial(_ge2e_kernel, N=N, M=M),
        out_shape=jax.ShapeDtypeStruct((1,), jnp.float32),
        in_specs=[
            pl.BlockSpec(memory_space=pltpu.MemorySpace.SMEM),   # w
            pl.BlockSpec(memory_space=pltpu.MemorySpace.VMEM),   # et (D, NM)
        ],
        out_specs=pl.BlockSpec(memory_space=pltpu.MemorySpace.SMEM),
        compiler_params=pltpu.CompilerParams(vmem_limit_bytes=vmem_limit),
        cost_estimate=cost,
    )(w_arr, et)
    return out[0]


def _ge2e_loss_ref(e, w, b):
    """Pure-JAX f32 reference mirroring the PyTorch forward, for verification."""
    N, M, D = e.shape
    c = jnp.mean(e, axis=1)                            # (N, D)
    s = jnp.sum(e, axis=1)                             # (N, D)
    ef = e.reshape(N * M, D)
    sim = ef @ c.T                                     # (NM, N)
    spk = jnp.arange(N * M) // M
    cj = (s[spk] - ef) / (M - 1)                       # (NM, D)
    diag_val = jnp.sum(cj * ef, axis=-1)               # (NM,)
    own = jax.nn.one_hot(spk, N, dtype=bool)
    sim = jnp.where(own, diag_val[:, None], sim)
    logits = w * sim + b
    logp = jax.nn.log_softmax(logits, axis=-1)
    return -jnp.mean(jnp.sum(jnp.where(own, logp, 0.0), axis=-1))


if __name__ == "__main__":
    key = jax.random.PRNGKey(0)
    N, M, D = 4, 8, 32                                 # speakers, utts/speaker, embed dim

    x = jax.random.normal(key, (N, M, D), dtype=jnp.float32)
    # GE2E expects L2-normalized embeddings
    e = x / jnp.linalg.norm(x, axis=-1, keepdims=True)

    # deterministic parameter init, matching nn.Parameter(10.0), nn.Parameter(-5.0)
    w = jnp.float32(10.0)
    b = jnp.float32(-5.0)

    loss = ge2e_loss(e, w, b)
    jax.block_until_ready(loss)

    ref = _ge2e_loss_ref(e, w, b)
    # bf16 MXU inputs (f32 accumulation) -> relaxed tolerance vs. the f32 reference
    assert jnp.allclose(loss, ref, rtol=2e-2, atol=2e-2), (loss, ref)

    print("KERNEL_OK")
</pallas_src>

<mosaic_0001>
module attributes {stable_mosaic.version = 11 : i64} {
  func.func @_ge2e_kernel(%arg0: memref<1xf32, #tpu.memory_space<smem>>, %arg1: memref<32x32xbf16, #tpu.memory_space<vmem>>, %arg2: memref<1xf32, #tpu.memory_space<smem>>) attributes {dimension_semantics = [], scalar_prefetch = 0 : i64, scratch_operands = 0 : i64, tpu.core_type = #tpu.core_type<tc>} {
    %c0 = arith.constant 0 : index
    %0 = memref.load %arg0[%c0] : memref<1xf32, #tpu.memory_space<smem>>
    %c0_0 = arith.constant 0 : index
    %c0_1 = arith.constant 0 : index
    %1 = vector.load %arg1[%c0_0, %c0_1] : memref<32x32xbf16, #tpu.memory_space<vmem>>, vector<32x32xbf16>
    %2 = tpu.iota {dimensions = array<i32: 0>} : vector<4x1xi32>
    %c8_i32 = arith.constant 8 : i32
    %3 = vector.broadcast %c8_i32 : i32 to vector<4x1xi32>
    %4 = arith.muli %2, %3 : vector<4x1xi32>
    %5 = tpu.iota {dimensions = array<i32: 1>} : vector<1x32xi32>
    %6 = vector.broadcast %5 : vector<1x32xi32> to vector<4x32xi32>
    %7 = vector.broadcast %4 : vector<4x1xi32> to vector<4x32xi32>
    %8 = arith.cmpi sge, %6, %7 : vector<4x32xi32>
    %c8_i32_2 = arith.constant 8 : i32
    %9 = vector.broadcast %c8_i32_2 : i32 to vector<4x1xi32>
    %10 = arith.addi %4, %9 : vector<4x1xi32>
    %11 = vector.broadcast %5 : vector<1x32xi32> to vector<4x32xi32>
    %12 = vector.broadcast %10 : vector<4x1xi32> to vector<4x32xi32>
    %13 = arith.cmpi slt, %11, %12 : vector<4x32xi32>
    %14 = arith.andi %8, %13 : vector<4x32xi1>
    %15 = arith.extui %14 : vector<4x32xi1> to vector<4x32xi32>
    %16 = arith.sitofp %15 : vector<4x32xi32> to vector<4x32xf32>
    %17 = arith.truncf %16 : vector<4x32xf32> to vector<4x32xbf16>
    %cst = arith.constant dense<0.000000e+00> : vector<32x4xf32>
    %18 = tpu.matmul %1, %17, %cst {dimension_numbers = #tpu.dot_dimension_numbers<[1], [1], [0], [0], [0, 0, 1, 0], [], []>} : vector<32x32xbf16>, vector<4x32xbf16>, vector<32x4xf32> -> vector<32x4xf32>
    %cst_3 = arith.constant 1.250000e-01 : f32
    %19 = arith.mulf %0, %cst_3 : f32
    %20 = vector.broadcast %19 : f32 to vector<32x4xf32>
    %21 = arith.mulf %18, %20 : vector<32x4xf32>
    %22 = arith.truncf %21 : vector<32x4xf32> to vector<32x4xbf16>
    %cst_4 = arith.constant dense<0.000000e+00> : vector<4x32xf32>
    %23 = tpu.matmul %22, %1, %cst_4 {dimension_numbers = #tpu.dot_dimension_numbers<[0], [0], [1], [1], [0, 1, 1, 1], [], []>} : vector<32x4xbf16>, vector<32x32xbf16>, vector<4x32xf32> -> vector<4x32xf32>
    %24 = arith.extf %1 : vector<32x32xbf16> to vector<32x32xf32>
    %25 = arith.mulf %24, %24 : vector<32x32xf32>
    %cst_5 = arith.constant dense<0.000000e+00> : vector<32xf32>
    %26 = vector.multi_reduction <add>, %25, %cst_5 [0] : vector<32x32xf32> to vector<32xf32>
    %27 = vector.shape_cast %26 : vector<32xf32> to vector<1x32xf32>
    %28 = vector.broadcast %0 : f32 to vector<1x32xf32>
    %29 = arith.mulf %28, %27 : vector<1x32xf32>
    %cst_6 = arith.constant 0.000000e+00 : f32
    %30 = vector.broadcast %cst_6 : f32 to vector<4x32xf32>
    %31 = arith.select %14, %23, %30 : vector<4x32xi1>, vector<4x32xf32>
    %cst_7 = arith.constant dense<0.000000e+00> : vector<32xf32>
    %32 = vector.multi_reduction <add>, %31, %cst_7 [0] : vector<4x32xf32> to vector<32xf32>
    %33 = vector.shape_cast %32 : vector<32xf32> to vector<1x32xf32>
    %cst_8 = arith.constant 8.000000e+00 : f32
    %34 = vector.broadcast %cst_8 : f32 to vector<1x32xf32>
    %35 = arith.mulf %34, %33 : vector<1x32xf32>
    %36 = arith.subf %35, %29 : vector<1x32xf32>
    %cst_9 = arith.constant 0.142857149 : f32
    %37 = vector.broadcast %cst_9 : f32 to vector<1x32xf32>
    %38 = arith.mulf %36, %37 : vector<1x32xf32>
    %39 = vector.shape_cast %38 : vector<1x32xf32> to vector<1x32xf32>
    %40 = vector.broadcast %39 : vector<1x32xf32> to vector<4x32xf32>
    %41 = arith.select %14, %40, %23 : vector<4x32xi1>, vector<4x32xf32>
    %cst_10 = arith.constant dense<0xFF800000> : vector<32xf32>
    %42 = vector.multi_reduction <maximumf>, %41, %cst_10 [0] : vector<4x32xf32> to vector<32xf32>
    %43 = vector.shape_cast %42 : vector<32xf32> to vector<1x32xf32>
    %44 = vector.broadcast %43 : vector<1x32xf32> to vector<4x32xf32>
    %45 = arith.subf %41, %44 : vector<4x32xf32>
    %46 = math.exp %45 : vector<4x32xf32>
    %cst_11 = arith.constant dense<0.000000e+00> : vector<32xf32>
    %47 = vector.multi_reduction <add>, %46, %cst_11 [0] : vector<4x32xf32> to vector<32xf32>
    %48 = vector.shape_cast %47 : vector<32xf32> to vector<1x32xf32>
    %49 = math.log %48 : vector<1x32xf32>
    %50 = arith.addf %43, %49 : vector<1x32xf32>
    %51 = arith.subf %50, %38 : vector<1x32xf32>
    %52 = vector.shape_cast %51 : vector<1x32xf32> to vector<1x1x32xf32>
    %cst_12 = arith.constant dense<0.000000e+00> : vector<1xf32>
    %53 = vector.multi_reduction <add>, %52, %cst_12 [1, 2] : vector<1x1x32xf32> to vector<1xf32>
    %54 = vector.shape_cast %53 : vector<1xf32> to vector<1x1x1xf32>
    %55 = vector.extract %54[0, 0, 0] : f32 from vector<1x1x1xf32>
    %cst_13 = arith.constant 3.200000e+01 : f32
    %56 = arith.divf %55, %cst_13 : f32
    %c0_14 = arith.constant 0 : index
    %57 = memref.load %arg2[%c0_14] : memref<1xf32, #tpu.memory_space<smem>>
    memref.store %56, %arg2[%c0_14] : memref<1xf32, #tpu.memory_space<smem>>
    return
  }
}

</mosaic_0001>

<llo_original>
// kernel: tpu_custom_call.1
$region0: #{tpu_custom_call.1}
  #allocation0 [shape = 'u32[]', space=smem, size = 0x4, offset = 0x4, fixed_abs, tag = 'smem constant byte address 0x4 - core index']
  #allocation1 [shape = 'u32[144,128]{1,0:T(1,128)}', space=vmem, size = 0x12000, scoped, tag = 'internal scratch']
  #allocation2 [shape = 'f32[1]{0:T(128)S(6)}', space=smem, size = 0x200, scoped, tag = 'scoped memory for tpu_custom_call.1']
  %s0 = inlined_call_operand.<no memory space> [shape: f32[1], index: 0, kind: input, shape index: {}]
  %s1 = inlined_call_operand.hbm [shape: bf16[32,32], index: 1, kind: input, shape index: {}]
  %s2 = inlined_call_operand.hbm [shape: f32[1], index: 2, kind: output, shape index: {}]
  %s3 = sld [smem:[#allocation0]]
  $region22: #{tpu_custom_call.1} parent=0
    _
  %s5 = ssub.s32 1, %s3
  %s6 = scalar_select 0, %s5, %s3
  %7 = sst [smem:[#allocation2]] %s0
  $region1: #{tpu_custom_call.1} parent=0
    #allocation3 [shape = 'u8[8192]{0}', space=vmem, size = 0x2000, scoped, tag = 'input window, operand 1, single buffered']
    #allocation4 [shape = 's32[1]{0}', space=sflag, size = 0x4, scoped, tag = 'scoped memory for tpu_custom_call.1']
    #allocation5 [shape = 's32[1]{0}', space=sflag, size = 0x4, scoped, tag = 'scoped memory for tpu_custom_call.1']
    #allocation6 [shape = 'u8[512]{0}', space=smem, size = 0x200, scoped, tag = 'output window, operand 0, single buffered']
    %8 = vsyncpa [#allocation4], 0
    %9 = vsyncpa [#allocation5], 0
    // Predicated region
    $region2: #{tpu_custom_call.1} parent=1 // pred_check
      _
    $region3: #{tpu_custom_call.1} parent=1 // pred_check_branch
      %11 = sbr.rel (0) target = $region5
    $region4: #{tpu_custom_call.1} parent=1 // pred_region
      _
    $region5: #{tpu_custom_call.1} parent=1 // pred_fallthru
      _
    // Predicated region
    $region6: #{tpu_custom_call.1} parent=1 // pred_check
      _
    $region7: #{tpu_custom_call.1} parent=1 // pred_check_branch
      %13 = sbr.rel (0) target = $region9
    $region8: #{tpu_custom_call.1} parent=1 // pred_region
      %s15 = ssub.s32 256, 256
      %16 = vsyncadd [#allocation4], %s15
      %s17 = sshll.u32 [#allocation3], 4
      %s18 = int_to_ptr.vmem [resolvable:$true] %s17
      %23 = dma.hbm_to_vmem [thread:$0]  %s1, 256, %s18, [#allocation4], 64, 64, 4
    $region9: #{tpu_custom_call.1} parent=1 // pred_fallthru
      _
    // Predicated region
    $region10: #{tpu_custom_call.1} parent=1 // pred_check
      _
    $region11: #{tpu_custom_call.1} parent=1 // pred_check_branch
      %25 = sbr.rel (0) target = $region13
    $region12: #{tpu_custom_call.1} parent=1 // pred_region
      %26 = dma.done [#allocation4], 256
    $region13: #{tpu_custom_call.1} parent=1 // pred_fallthru
      _
    %s28 = sld [smem:[#allocation2]]
    %v29 = vld [vmem:[#allocation3] sm:$0xf]
    %v30 = vld [vmem:[#allocation3 + $0x4] sm:$0xf]
    %v31 = vld [vmem:[#allocation3 + $0x8] sm:$0xf]
    %v32 = vld [vmem:[#allocation3 + $0xc] sm:$0xf]
    %v33 = vlaneseq
    %v34 = vshrl.u32 %v33, 7
    %v35 = vmul.u32 %v34, 8
    %v36 = vlaneseq
    %v37 = vand.u32 %v36, 127
    %vm38 = vcmp.ge.s32.totalorder %v37, %v35
    %v39 = vadd.s32 %v35, 8
    %vm40 = vcmp.lt.s32.totalorder %v37, %v39
    %vm41 = vmand %vm38, %vm40
    %v42 = vsel %vm41, 1, 0
    %v43 = vcvt.s32.f32 %v42
    %v44 = vpack.c.bf16 %v43, %v43
    %v49 = vunpack.c.l.b16 %v29
    %v50 = vunpack.c.l.b16 %v30
    %v51 = vunpack.c.l.b16 %v31
    %v52 = vunpack.c.l.b16 %v32
    %v53 = vpack.c.b16 %v50, %v49
    %v54 = vpack.c.b16 %v52, %v51
    %vm55 = vcmask 261120
    %v57 = vsel %vm55, %v53, 0
    %v60 = vsel %vm55, %v54, 0
    %v63 = vsel %vm55, %v44, 0
    %65 = vmatprep.subr.bf16.mxu0 0
    %66 = vmatpush1.bf16.xpose.msra.mxu0 %v63
    %67 = vmatprep.subr.bf16.mxu0 0
    %68 = vmatpush1.bf16.xpose.msra.mxu0 0
    %69 = vmatprep.subr.bf16.mxu0 0
    %70 = vmatpush1.bf16.xpose.msra.mxu0 0
    %71 = vmatprep.subr.bf16.mxu0 0
    %72 = vmatpush1.bf16.xpose.msra.mxu0 0
    %73 = vmatprep.subr.bf16.mxu0 0
    %74 = vmatpush1.bf16.xpose.msra.mxu0 0
    %75 = vmatprep.subr.bf16.mxu0 0
    %76 = vmatpush1.bf16.xpose.msra.mxu0 0
    %77 = vmatprep.subr.bf16.mxu0 0
    %78 = vmatpush1.bf16.xpose.msra.mxu0 0
    %79 = vmatprep.subr.bf16.mxu0 0
    %80 = vmatpush1.bf16.xpose.msra.mxu0 0
    %81 = vmatprep.subr.bf16.mxu0 0
    %82 = vmatpush1.bf16.xpose.msra.mxu0 0
    %83 = vmatprep.subr.bf16.mxu0 0
    %84 = vmatpush1.bf16.xpose.msra.mxu0 0
    %85 = vmatprep.subr.bf16.mxu0 0
    %86 = vmatpush1.bf16.xpose.msra.mxu0 0
    %87 = vmatprep.subr.bf16.mxu0 0
    %88 = vmatpush1.bf16.xpose.msra.mxu0 0
    %89 = vmatprep.subr.bf16.mxu0 0
    %90 = vmatpush1.bf16.xpose.msra.mxu0 0
    %91 = vmatprep.subr.bf16.mxu0 0
    %92 = vmatpush1.bf16.xpose.msra.mxu0 0
    %93 = vmatprep.subr.bf16.mxu0 0
    %94 = vmatpush1.bf16.xpose.msra.mxu0 0
    %95 = vmatprep.subr.bf16.mxu0 0
    %96 = vmatpush1.bf16.xpose.msra.mxu0 0
    %97 = vmatprep.mubr.bf16.mxu0 0
    %98 = vmatmul.mubr.bf16.gmra.mrb[0].mxu0 %v57
    %v99 = vpop.f32.mrb[0].mxu0
    %v100 = vadd.f32 0.0, %v99
    %v101 = vpop.f32.mrb[0].mxu0
    %v102 = vpop.f32.mrb[0].mxu0
    %v103 = vadd.f32 0.0, %v102
    %v104 = vpop.f32.mrb[0].mxu0
    %105 = vmatprep.mubr.bf16.mxu0 0
    %106 = vmatmul.mubr.bf16.gmra.mrb[0].mxu0 %v60
    %v107 = vpop.f32.mrb[0].mxu0
    %v108 = vadd.f32 0.0, %v107
    %v109 = vpop.f32.mrb[0].mxu0
    %v110 = vpop.f32.mrb[0].mxu0
    %v111 = vadd.f32 0.0, %v110
    %v112 = vpop.f32.mrb[0].mxu0
    %113 = vdwg.mxu0
    %s114 = smul.f32 %s28, 0.125
    %v115 = vstv %s114
    %v116 = vmul.f32 %v100, %v115
    %v117 = vmul.f32 %v103, %v115
    %v118 = vmul.f32 %v108, %v115
    %v119 = vmul.f32 %v111, %v115
    %v120 = vpack.c.bf16 %v117, %v116
    %v121 = vpack.c.bf16 %v119, %v118
    %122 = vxpose.xlu0.c.b16.start [1/8] %v120, 128
    %123 = vxpose.xlu0.c.b16.cont [2/8] %v121, 128
    %124 = vxpose.xlu0.c.b16.cont [3/8] 0, 128
    %125 = vxpose.xlu0.c.b16.cont [4/8] 0, 128
    %126 = vxpose.xlu0.c.b16.cont [5/8] 0, 128
    %127 = vxpose.xlu0.c.b16.cont [6/8] 0, 128
    %128 = vxpose.xlu0.c.b16.cont [7/8] 0, 128
    %129 = vxpose.xlu0.c.b16.end [8/8] 0, 128
    %v130 = vpop.trf.xlu0
    %v131 = vpop.trf.xlu0
    %v132 = vpop.trf.xlu0
    %v133 = vpop.trf.xlu0
    %v134 = vpop.trf.xlu0
    %v135 = vpop.trf.xlu0
    %v136 = vpop.trf.xlu0
    %v137 = vpop.trf.xlu0
    %v141 = vsel %vm55, %v130, 0
    %143 = vmatprep.subr.bf16.mxu0 0
    %144 = vmatpush1.bf16.msra.mxu0 %v53
    %145 = vmatprep.subr.bf16.mxu0 0
    %146 = vmatpush1.bf16.msra.mxu0 %v54
    %147 = vmatprep.subr.bf16.mxu0 0
    %148 = vmatpush1.bf16.msra.mxu0 0
    %149 = vmatprep.subr.bf16.mxu0 0
    %150 = vmatpush1.bf16.msra.mxu0 0
    %151 = vmatprep.subr.bf16.mxu0 0
    %152 = vmatpush1.bf16.msra.mxu0 0
    %153 = vmatprep.subr.bf16.mxu0 0
    %154 = vmatpush1.bf16.msra.mxu0 0
    %155 = vmatprep.subr.bf16.mxu0 0
    %156 = vmatpush1.bf16.msra.mxu0 0
    %157 = vmatprep.subr.bf16.mxu0 0
    %158 = vmatpush1.bf16.msra.mxu0 0
    %159 = vmatprep.subr.bf16.mxu0 0
    %160 = vmatpush1.bf16.msra.mxu0 0
    %161 = vmatprep.subr.bf16.mxu0 0
    %162 = vmatpush1.bf16.msra.mxu0 0
    %163 = vmatprep.subr.bf16.mxu0 0
    %164 = vmatpush1.bf16.msra.mxu0 0
    %165 = vmatprep.subr.bf16.mxu0 0
    %166 = vmatpush1.bf16.msra.mxu0 0
    %167 = vmatprep.subr.bf16.mxu0 0
    %168 = vmatpush1.bf16.msra.mxu0 0
    %169 = vmatprep.subr.bf16.mxu0 0
    %170 = vmatpush1.bf16.msra.mxu0 0
    %171 = vmatprep.subr.bf16.mxu0 0
    %172 = vmatpush1.bf16.msra.mxu0 0
    %173 = vmatprep.subr.bf16.mxu0 0
    %174 = vmatpush1.bf16.msra.mxu0 0
    %175 = vmatprep.mubr.bf16.mxu0 0
    %176 = vmatmul.mubr.bf16.gmra.mrb[0].mxu0 %v141
    %v177 = vpop.f32.mrb[0].mxu0
    %v178 = vadd.f32 0.0, %v177
    %v179 = vpop.f32.mrb[0].mxu0
    %v180 = vpop.f32.mrb[0].mxu0
    %v181 = vpop.f32.mrb[0].mxu0
    %182 = vdwg.mxu0
    %v183 = vunpack.c.l.bf16 %v29
    %v184 = vunpack.c.l.bf16 %v30
    %v185 = vunpack.c.l.bf16 %v31
    %v186 = vunpack.c.l.bf16 %v32
    %v187 = vmul.f32 %v183, %v183
    %v188 = vmul.f32 %v184, %v184
    %v189 = vmul.f32 %v185, %v185
    %v190 = vmul.f32 %v186, %v186
    %v191 = vsel %vm55, %v187, 0.0
    %v192 = vsel %vm55, %v188, 0.0
    %v193 = vadd.f32 %v191, %v192
    %v194 = vsel %vm55, %v189, 0.0
    %v195 = vadd.f32 %v193, %v194
    %v196 = vsel %vm55, %v190, 0.0
    %v197 = vadd.f32 %v195, %v196
    %v198 = vrot.slane %v197, 4
    %v199 = vadd.f32 %v197, %v198
    %v200 = vrot.slane %v199, 2
    %v201 = vadd.f32 %v199, %v200
    %v202 = vrot.slane %v201, 1
    %v203 = vadd.f32 %v201, %v202
    %v204 = vstv %s28
    %v205 = vmul.f32 %v204, %v203
    %v206 = vsel %vm41, %v178, 0.0
    %vm207 = vcmask 257024
    %v208 = vsel %vm207, %v206, 0.0
    %v209 = vrot.slane %v208, 4
    %v210 = vadd.f32 %v208, %v209
    %v211 = vrot.slane %v210, 2
    %v212 = vadd.f32 %v210, %v211
    %v213 = vrot.slane %v212, 1
    %v214 = vadd.f32 %v212, %v213
    %v215 = vmul.f32 %v214, 8.0
    %v216 = vsub.f32 %v215, %v205
    %v217 = vmul.f32 %v216, 0.14285715
    %v218 = vsel %vm41, %v217, %v178
    %v219 = vsel %vm207, %v218, -inf
    %v220 = vrot.slane %v219, 4
    %v221 = vmax.f32 %v219, %v220
    %v222 = vrot.slane %v221, 2
    %v223 = vmax.f32 %v221, %v222
    %v224 = vrot.slane %v223, 1
    %v225 = vmax.f32 %v223, %v224
    %v226 = vsub.f32 %v218, %v225
    %v227 = vmul.f32 %v226, 1.442695
    %v228 = vpow.pop %v227
    %v229 = vsel %vm207, %v228, 0.0
    %v230 = vrot.slane %v229, 4
    %v231 = vadd.f32 %v229, %v230
    %v232 = vrot.slane %v231, 2
    %v233 = vadd.f32 %v231, %v232
    %v234 = vrot.slane %v233, 1
    %v235 = vadd.f32 %v233, %v234
    %v236 = vlog2.pop %v235
    %v237 = vmul.f32 %v236, 0.6931472
    %v238 = vadd.f32 %v225, %v237
    %v239 = vsub.f32 %v238, %v217
    %vm240 = vcmask 253952
    %v241 = vsel %vm240, %v239, 0.0
    %242 = vadd.xlane.f32.xlu0 %v241
    %v243 = vpop.xlane.xlu0 %242
    %v244 = vrot.slane %v243, 4
    %v245 = vadd.f32 %v243, %v244
    %v246 = vrot.slane %v245, 2
    %v247 = vadd.f32 %v245, %v246
    %v248 = vrot.slane %v247, 1
    %v249 = vadd.f32 %v247, %v248
    %s250 = vtos %v249
    %v251 = vrcp.pop 32.0
    %s252 = vtos %v251
    %s253 = smul.f32 %s250, %s252
    %s254 = scalar_lea.smem [#allocation6], 0
    %255 = sst [smem:[%s254]] %s253
    // Predicated region
    $region14: #{tpu_custom_call.1} parent=1 // pred_check
      _
    $region15: #{tpu_custom_call.1} parent=1 // pred_check_branch
      %257 = sbr.rel (0) target = $region17
    $region16: #{tpu_custom_call.1} parent=1 // pred_region
      %s259 = ssub.s32 16, 16
      %260 = vsyncadd [#allocation5], %s259
      %263 = dma.smem_to_hbm [#allocation6], 16, %s2, [#allocation5]
    $region17: #{tpu_custom_call.1} parent=1 // pred_fallthru
      _
    // Predicated region
    $region18: #{tpu_custom_call.1} parent=1 // pred_check
      _
    $region19: #{tpu_custom_call.1} parent=1 // pred_check_branch
      %265 = sbr.rel (0) target = $region21
    $region20: #{tpu_custom_call.1} parent=1 // pred_region
      %266 = dma.done [#allocation5], 16
    $region21: #{tpu_custom_call.1} parent=1 // pred_fallthru
      _
    %267 = sfence
    %268 = vsyncpa [#allocation4], 1
    %269 = vsyncpa [#allocation5], 1

</llo_original>
